<compile_context>
chip_gen: v6e
topology: v6e:2x2x1
jax: 0.10.0
libtpu: 0.0.40
codegen_flags: <defaults>
</compile_context>

<pallas_src>
import jax
import jax.numpy as jnp
from jax import lax
from jax.experimental import pallas as pl
from jax.experimental.pallas import tpu as pltpu


# ---------------------------------------------------------------------------
# Device-aware sizing
# ---------------------------------------------------------------------------

def _device_kind():
    try:
        return jax.devices()[0].device_kind.lower()
    except Exception:
        return ""


def _target_block_bytes(kind):
    # Per-input block target: large enough to hide the ~0.35us/step pipeline overhead
    # at each generation's HBM bandwidth, small enough to double-buffer in VMEM.
    if "v7" in kind:
        return 8 << 20          # ~5us/step at ~3.2 TB/s  -> <10% overhead
    if "v6" in kind:
        return 6 << 20          # ~9us/step at ~1.4 TB/s
    return 4 << 20              # v5e (~10us/step at ~0.8 TB/s) and unknown chips


def _vmem_cap_bytes(kind):
    # v7x has 64 MiB physical VMEM per core; v5e/v6e have 128 MiB.
    return (44 << 20) if "v7" in kind else (96 << 20)


def _vmem_limit_bytes(block_bytes, cap):
    # double-buffered pipeline blocks + compiler slack
    need = 2 * int(sum(block_bytes)) + (4 << 20)
    return int(min(max(need, 16 << 20), cap))


# ---------------------------------------------------------------------------
# Tiling pickers
# ---------------------------------------------------------------------------

def _sublane_granule(itemsize):
    # f32 -> 8, bf16/f16 -> 16, int8/fp8 -> 32
    return max(8, 32 // itemsize)


def _pick_plain_tiling(N, L, itemsize, target_bytes, min_steps):
    """Rows x lanes tiling of the flattened (N, L=C*H*W) arrays (mask=None path)."""
    sub = _sublane_granule(itemsize)
    b_min = N if N < sub else sub
    if L <= 128:
        l_blk = L                                             # full lane extent
    else:
        want_l = (target_bytes // max(1, b_min * itemsize)) // 128 * 128
        l_blk = int(max(128, min(want_l, (L // 128) * 128)))  # 128-multiple, <= L
    if N < sub:
        b_blk = N                                             # full batch (small N)
    else:
        row_cap = (N // sub) * sub
        want = max(sub, (target_bytes // (l_blk * itemsize)) // sub * sub)
        b_blk = int(min(want, row_cap))
    # v7x megacore: make sure both TensorCores get at least one step.
    if min_steps > 1 and pl.cdiv(N, b_blk) * pl.cdiv(L, l_blk) < min_steps:
        if l_blk >= 256:
            l_blk = max(128, (l_blk // 2) // 128 * 128)
        elif N >= 2 * sub and b_blk >= 2 * sub:
            b_blk = max(sub, (b_blk // 2) // sub * sub)
    return b_blk, l_blk


def _pick_masked_tiling(N, C, HW, itemsize, target_bytes, min_steps):
    """Pick (b_blk, hw_blk, k): blocks are (b_blk rows) x (k*hw_blk lanes) where
    hw_blk | H*W (lane chunk inside one channel) and k | C (whole channels per block;
    k > 1 only with hw_blk == H*W so channel boundaries stay block-aligned)."""
    sub = _sublane_granule(itemsize)
    aligned = (HW % 128 == 0)
    b_min = N if N < sub else sub

    if aligned:
        hw_divs = [d for d in range(128, HW + 1, 128) if HW % d == 0]
        hw_blk = hw_divs[-1]                       # prefer full channel width
        for d in reversed(hw_divs):
            hw_blk = d
            if b_min * d * itemsize <= target_bytes:
                break
    else:
        # H*W not 128-aligned: lane blocks must span whole flattened rows (C*H*W);
        # the C channels are reduced with in-kernel lane slices.
        # TODO(synk): if a single flattened row (C*H*W) exceeds VMEM this path cannot
        # tile further (only reachable when H*W is not a multiple of 128).
        hw_blk = HW

    lane_per_blk_ch = hw_blk if aligned else C * HW
    if N < sub:
        b_blk = N
    else:
        row_cap = (N // sub) * sub
        want = max(sub, (target_bytes // (lane_per_blk_ch * itemsize)) // sub * sub)
        b_blk = int(min(want, row_cap))

    if aligned:
        k = 1
        if hw_blk == HW:
            # rows are exhausted (small N): pack several whole channels per block so the
            # per-step DMA still reaches the byte target.
            per_ch = max(1, b_blk * HW * itemsize)
            k_max = max(1, target_bytes // per_ch)
            k = max(d for d in range(1, C + 1) if C % d == 0 and d <= k_max)
    else:
        k = C

    # v7x megacore: guarantee >= 2 grid steps.
    if min_steps > 1:
        nb, nhw, nc = pl.cdiv(N, b_blk), HW // hw_blk, C // k
        if nb * nhw * nc < min_steps:
            if aligned and k > 1:
                k = max(d for d in range(1, k) if C % d == 0)
            elif aligned and hw_blk > 128:
                smaller = [d for d in range(128, hw_blk, 128) if HW % d == 0]
                if smaller:
                    hw_blk = smaller[-1]
            elif N >= 2 * sub and b_blk >= 2 * sub:
                b_blk = max(sub, (b_blk // 2) // sub * sub)
    return b_blk, hw_blk, k


# ---------------------------------------------------------------------------
# Kernels
# ---------------------------------------------------------------------------

def _make_plain_kernel(b_blk, l_blk, n_rows, n_lanes, row_tail, lane_tail):
    """mask=None: per-step partial sum of squared errors over a dense (rows, lanes) tile."""
    def kernel(out_ref, tgt_ref, part_ref):
        o = out_ref[...].astype(jnp.float32)
        t = tgt_ref[...].astype(jnp.float32)
        d = o - t
        if row_tail or lane_tail:
            valid = None
            if row_tail:
                rid = (lax.broadcasted_iota(jnp.int32, (b_blk, l_blk), 0)
                       + pl.program_id(0) * b_blk)
                valid = rid < n_rows
            if lane_tail:
                lid = (lax.broadcasted_iota(jnp.int32, (b_blk, l_blk), 1)
                       + pl.program_id(1) * l_blk)
                lv = lid < n_lanes
                valid = lv if valid is None else (valid & lv)
            d = jnp.where(valid, d, 0.0)
        part_ref[0, 0] = jnp.sum(d * d)
    return kernel


def _make_masked_kernel(b_blk, hw_blk, k, n_rows, row_tail):
    """Numerator partial for one (b_blk, k*hw_blk) block: sum the k channel slabs of
    (o-t)^2 first (full-vreg adds), then one multiply by the pooled mask and one
    cross-lane reduce."""
    def kernel(out_ref, tgt_ref, pm_ref, part_ref):
        pm = pm_ref[...].astype(jnp.float32)                      # (b_blk, hw_blk)
        rv = None
        if row_tail:                                              # ragged batch tail
            rid = (lax.broadcasted_iota(jnp.int32, (b_blk, hw_blk), 0)
                   + pl.program_id(0) * b_blk)
            rv = rid < n_rows
            pm = jnp.where(rv, pm, 0.0)

        def slab_sq(start):
            o = out_ref[:, pl.ds(start, hw_blk)].astype(jnp.float32)
            t = tgt_ref[:, pl.ds(start, hw_blk)].astype(jnp.float32)
            d = o - t
            if row_tail:
                d = jnp.where(rv, d, 0.0)
            return d * d

        if k <= 8:                                   # static unroll for few channels/block
            acc = slab_sq(0)
            for j in range(1, k):
                acc = acc + slab_sq(j * hw_blk)
        else:                                        # bounded code size for large C
            def body(j, a):
                start = j * hw_blk
                if hw_blk % 128 == 0:
                    start = pl.multiple_of(start, 128)
                return a + slab_sq(start)
            acc = lax.fori_loop(1, k, body, slab_sq(0))

        part_ref[0, 0] = jnp.sum(acc * pm)
    return kernel


# ---------------------------------------------------------------------------
# Wrapper
# ---------------------------------------------------------------------------

def masked_l2_loss(output, target, mask=None):
    """Pallas implementation of MaskedL2Loss.forward (returns a scalar f32)."""
    assert output.shape == target.shape and output.ndim == 4
    N, C, H, W = output.shape
    HW = H * W
    L = C * HW
    itemsize = jnp.dtype(output.dtype).itemsize

    kind = _device_kind()
    target_bytes = _target_block_bytes(kind)
    vmem_cap = _vmem_cap_bytes(kind)
    min_steps = 2 if "v7" in kind else 1

    # Free, contiguous reshape to a lane-dense 2-D view (no transpose, no copy).
    out2 = output.reshape(N, L)
    tgt2 = target.reshape(N, L)

    # -------------------------- mask=None path --------------------------
    if mask is None:
        b_blk, l_blk = _pick_plain_tiling(N, L, itemsize, target_bytes, min_steps)
        nb, nl = pl.cdiv(N, b_blk), pl.cdiv(L, l_blk)
        row_tail = (N % b_blk) != 0
        lane_tail = (L % l_blk) != 0
        vmem_limit = _vmem_limit_bytes([b_blk * l_blk * itemsize] * 2, vmem_cap)

        kernel = _make_plain_kernel(b_blk, l_blk, N, L, row_tail, lane_tail)
        partials = pl.pallas_call(
            kernel,
            out_shape=jax.ShapeDtypeStruct((nb * nl, 1), jnp.float32),
            grid_spec=pltpu.PrefetchScalarGridSpec(
                num_scalar_prefetch=0,
                grid=(nb, nl),
                in_specs=[
                    pl.BlockSpec((b_blk, l_blk), lambda b, l: (b, l)),
                    pl.BlockSpec((b_blk, l_blk), lambda b, l: (b, l)),
                ],
                out_specs=pl.BlockSpec((1, 1), lambda b, l: (b * nl + l, 0),
                                       memory_space=pltpu.SMEM),
            ),
            compiler_params=pltpu.CompilerParams(
                dimension_semantics=("parallel", "parallel"),
                vmem_limit_bytes=vmem_limit),
        )(out2, tgt2)
        return jnp.sum(partials) / jnp.float32(N * C * HW)

    # --------------------------- masked path ----------------------------
    assert mask.ndim == 4 and mask.shape[0] == N and mask.shape[1] == 1, \
        "mask expected as (N, 1, HM, WM)"
    _, _, HM, WM = mask.shape
    sh, sw = HM // H, WM // W
    assert sh >= 1 and sw >= 1
    # avg_pool2d(kernel=stride=(sh,sw), ceil_mode=False) floor semantics: the pooled map
    # must be exactly (H, W) for PyTorch's expand_as to succeed.
    assert HM // sh == H and WM // sw == W, "pooled mask must have spatial size (H, W)"

    # Tiny pooled mask (N*H*W floats) computed once XLA-side; crop trailing rows/cols to
    # match avg_pool2d's window semantics exactly.
    mf = mask.astype(jnp.float32)[:, 0, :H * sh, :W * sw]
    pooled_f32 = mf.reshape(N, H, sh, W, sw).mean(axis=(2, 4)).reshape(N, HW)
    # Denominator entirely in the wrapper (kernel only produces numerator partials).
    den = jnp.sum(pooled_f32) * jnp.float32(C)
    # Stream the pooled mask in bf16 when the inputs are bf16 (halves mask traffic);
    # in-kernel accumulation stays f32.
    if jnp.dtype(output.dtype) == jnp.dtype(jnp.bfloat16):
        pm = pooled_f32.astype(jnp.bfloat16)
    else:
        pm = pooled_f32
    pm_itemsize = jnp.dtype(pm.dtype).itemsize

    b_blk, hw_blk, k = _pick_masked_tiling(N, C, HW, itemsize, target_bytes, min_steps)
    nb, nhw, nc = pl.cdiv(N, b_blk), HW // hw_blk, C // k
    row_tail = (N % b_blk) != 0
    lane_w = k * hw_blk                                   # lane width of one input block

    vmem_limit = _vmem_limit_bytes(
        [b_blk * lane_w * itemsize] * 2 + [b_blk * hw_blk * pm_itemsize], vmem_cap)

    kernel = _make_masked_kernel(b_blk, hw_blk, k, N, row_tail)
    partials = pl.pallas_call(
        kernel,
        out_shape=jax.ShapeDtypeStruct((nb * nhw * nc, 1), jnp.float32),
        grid_spec=pltpu.PrefetchScalarGridSpec(
            num_scalar_prefetch=0,
            # Channel axis innermost: the pooled-mask block index (b, h) is unchanged
            # across consecutive steps, so its DMA is elided by the pipeline.
            grid=(nb, nhw, nc),
            in_specs=[
                pl.BlockSpec((b_blk, lane_w), lambda b, h, c: (b, c * nhw + h)),
                pl.BlockSpec((b_blk, lane_w), lambda b, h, c: (b, c * nhw + h)),
                pl.BlockSpec((b_blk, hw_blk), lambda b, h, c: (b, h)),
            ],
            out_specs=pl.BlockSpec((1, 1), lambda b, h, c: ((b * nhw + h) * nc + c, 0),
                                   memory_space=pltpu.SMEM),
        ),
        compiler_params=pltpu.CompilerParams(
            dimension_semantics=("parallel", "parallel", "parallel"),
            vmem_limit_bytes=vmem_limit),
    )(out2, tgt2, pm)

    # Combine the per-block f32 partials once; all-zero mask -> 0/0 = NaN (as in PyTorch).
    return jnp.sum(partials) / den


# ---------------------------------------------------------------------------
# Pure-JAX reference (for the self-check)
# ---------------------------------------------------------------------------

def _reference(output, target, mask=None):
    loss = (output.astype(jnp.float32) - target.astype(jnp.float32)) ** 2
    if mask is None:
        return jnp.mean(loss)
    N, C, H, W = loss.shape
    _, _, HM, WM = mask.shape
    sh, sw = HM // H, WM // W
    m = mask.astype(jnp.float32)[:, :, :H * sh, :W * sw]
    m = m.reshape(N, 1, H, sh, W, sw).mean(axis=(3, 5))
    m = jnp.broadcast_to(m, loss.shape)
    return jnp.sum(loss * m) / jnp.sum(m)


if __name__ == "__main__":
    key = jax.random.PRNGKey(0)
    k1, k2, k3 = jax.random.split(key, 3)

    N, C, H, W = 2, 4, 16, 16
    HM, WM = 32, 32  # mask at 2x spatial resolution -> avg_pool with (2, 2)

    output = jax.random.normal(k1, (N, C, H, W), dtype=jnp.float32)
    target = jax.random.normal(k2, (N, C, H, W), dtype=jnp.float32)
    mask = (jax.random.uniform(k3, (N, 1, HM, WM)) > 0.5).astype(jnp.float32)

    # masked path
    got_masked = jax.block_until_ready(masked_l2_loss(output, target, mask))
    ref_masked = _reference(output, target, mask)

    # mask=None path
    got_plain = jax.block_until_ready(masked_l2_loss(output, target, None))
    ref_plain = _reference(output, target, None)

    ok = (jnp.allclose(got_masked, ref_masked, rtol=1e-5, atol=1e-5)
          and jnp.allclose(got_plain, ref_plain, rtol=1e-5, atol=1e-5))
    if not ok:
        raise AssertionError(
            f"mismatch: masked {got_masked} vs {ref_masked}, "
            f"plain {got_plain} vs {ref_plain}")
    print("KERNEL_OK")
</pallas_src>

<mosaic_0001>
module attributes {stable_mosaic.version = 11 : i64} {
  func.func @kernel(%arg0: i32, %arg1: i32, %arg2: i32, %arg3: memref<2x1024xf32, #tpu.memory_space<vmem>>, %arg4: memref<2x1024xf32, #tpu.memory_space<vmem>>, %arg5: memref<2x256xf32, #tpu.memory_space<vmem>>, %arg6: memref<1x1xf32, #tpu.memory_space<smem>>) attributes {dimension_semantics = [#tpu.dimension_semantics<parallel>, #tpu.dimension_semantics<parallel>, #tpu.dimension_semantics<parallel>], iteration_bounds = array<i64: 1, 1, 1>, scalar_prefetch = 0 : i64, scratch_operands = 0 : i64, tpu.core_type = #tpu.core_type<tc>, window_params = [{transform_indices = @transform_0, window_bounds = array<i64: 2, 1024>}, {transform_indices = @transform_1, window_bounds = array<i64: 2, 1024>}, {transform_indices = @transform_2, window_bounds = array<i64: 2, 256>}, {transform_indices = @transform_3, window_bounds = array<i64: 1, 1>}]} {
    %c0 = arith.constant 0 : index
    %c0_0 = arith.constant 0 : index
    %0 = vector.load %arg5[%c0, %c0_0] : memref<2x256xf32, #tpu.memory_space<vmem>>, vector<2x256xf32>
    %c0_1 = arith.constant 0 : index
    %c0_2 = arith.constant 0 : index
    %1 = vector.load %arg3[%c0_1, %c0_2] : memref<2x1024xf32, #tpu.memory_space<vmem>>, vector<2x256xf32>
    %c0_3 = arith.constant 0 : index
    %c0_4 = arith.constant 0 : index
    %2 = vector.load %arg4[%c0_3, %c0_4] : memref<2x1024xf32, #tpu.memory_space<vmem>>, vector<2x256xf32>
    %3 = arith.subf %1, %2 : vector<2x256xf32>
    %4 = arith.mulf %3, %3 : vector<2x256xf32>
    %c0_5 = arith.constant 0 : index
    %c256 = arith.constant 256 : index
    %5 = vector.load %arg3[%c0_5, %c256] : memref<2x1024xf32, #tpu.memory_space<vmem>>, vector<2x256xf32>
    %c0_6 = arith.constant 0 : index
    %c256_7 = arith.constant 256 : index
    %6 = vector.load %arg4[%c0_6, %c256_7] : memref<2x1024xf32, #tpu.memory_space<vmem>>, vector<2x256xf32>
    %7 = arith.subf %5, %6 : vector<2x256xf32>
    %8 = arith.mulf %7, %7 : vector<2x256xf32>
    %9 = arith.addf %4, %8 : vector<2x256xf32>
    %c0_8 = arith.constant 0 : index
    %c512 = arith.constant 512 : index
    %10 = vector.load %arg3[%c0_8, %c512] : memref<2x1024xf32, #tpu.memory_space<vmem>>, vector<2x256xf32>
    %c0_9 = arith.constant 0 : index
    %c512_10 = arith.constant 512 : index
    %11 = vector.load %arg4[%c0_9, %c512_10] : memref<2x1024xf32, #tpu.memory_space<vmem>>, vector<2x256xf32>
    %12 = arith.subf %10, %11 : vector<2x256xf32>
    %13 = arith.mulf %12, %12 : vector<2x256xf32>
    %14 = arith.addf %9, %13 : vector<2x256xf32>
    %c0_11 = arith.constant 0 : index
    %c768 = arith.constant 768 : index
    %15 = vector.load %arg3[%c0_11, %c768] : memref<2x1024xf32, #tpu.memory_space<vmem>>, vector<2x256xf32>
    %c0_12 = arith.constant 0 : index
    %c768_13 = arith.constant 768 : index
    %16 = vector.load %arg4[%c0_12, %c768_13] : memref<2x1024xf32, #tpu.memory_space<vmem>>, vector<2x256xf32>
    %17 = arith.subf %15, %16 : vector<2x256xf32>
    %18 = arith.mulf %17, %17 : vector<2x256xf32>
    %19 = arith.addf %14, %18 : vector<2x256xf32>
    %20 = arith.mulf %19, %0 : vector<2x256xf32>
    %21 = vector.shape_cast %20 : vector<2x256xf32> to vector<1x2x256xf32>
    %cst = arith.constant dense<0.000000e+00> : vector<1xf32>
    %22 = vector.multi_reduction <add>, %21, %cst [1, 2] : vector<1x2x256xf32> to vector<1xf32>
    %23 = vector.shape_cast %22 : vector<1xf32> to vector<1x1x1xf32>
    %24 = vector.extract %23[0, 0, 0] : f32 from vector<1x1x1xf32>
    %c0_14 = arith.constant 0 : index
    %c0_15 = arith.constant 0 : index
    %25 = memref.load %arg6[%c0_14, %c0_15] : memref<1x1xf32, #tpu.memory_space<smem>>
    memref.store %24, %arg6[%c0_14, %c0_15] : memref<1x1xf32, #tpu.memory_space<smem>>
    return
  }
  func.func @transform_0(%arg0: i32, %arg1: i32, %arg2: i32) -> (i32, i32) {
    %c1_i32 = arith.constant 1 : i32
    %0 = arith.muli %arg2, %c1_i32 : i32
    %1 = arith.addi %0, %arg1 : i32
    %c0_i32 = arith.constant 0 : i32
    return %arg0, %1 : i32, i32
  }
  func.func @transform_1(%arg0: i32, %arg1: i32, %arg2: i32) -> (i32, i32) {
    %c1_i32 = arith.constant 1 : i32
    %0 = arith.muli %arg2, %c1_i32 : i32
    %1 = arith.addi %0, %arg1 : i32
    %c0_i32 = arith.constant 0 : i32
    return %arg0, %1 : i32, i32
  }
  func.func @transform_2(%arg0: i32, %arg1: i32, %arg2: i32) -> (i32, i32) {
    %c0_i32 = arith.constant 0 : i32
    return %arg0, %arg1 : i32, i32
  }
  func.func @transform_3(%arg0: i32, %arg1: i32, %arg2: i32) -> (i32, i32) {
    %c1_i32 = arith.constant 1 : i32
    %0 = arith.muli %arg0, %c1_i32 : i32
    %1 = arith.addi %0, %arg1 : i32
    %c1_i32_0 = arith.constant 1 : i32
    %2 = arith.muli %1, %c1_i32_0 : i32
    %3 = arith.addi %2, %arg2 : i32
    %c0_i32 = arith.constant 0 : i32
    %c0_i32_1 = arith.constant 0 : i32
    return %3, %c0_i32 : i32, i32
  }
}

</mosaic_0001>

<llo_original>
// kernel: tpu_custom_call.1
$region0: #{tpu_custom_call.1}
  #allocation0 [shape = 'u32[]', space=smem, size = 0x4, offset = 0x4, fixed_abs, tag = 'smem constant byte address 0x4 - core index']
  #allocation1 [shape = 'u32[144,128]{1,0:T(1,128)}', space=vmem, size = 0x12000, scoped, tag = 'internal scratch']
  %s0 = inlined_call_operand.hbm [shape: f32[2,1024], index: 0, kind: input, shape index: {}]
  %s1 = inlined_call_operand.hbm [shape: f32[2,1024], index: 1, kind: input, shape index: {}]
  %s2 = inlined_call_operand.hbm [shape: f32[2,256], index: 2, kind: input, shape index: {}]
  %s3 = inlined_call_operand.hbm [shape: f32[1,1], index: 3, kind: output, shape index: {}]
  %s4 = sld [smem:[#allocation0]]
  $region34: #{tpu_custom_call.1} parent=0
    _
  %s6 = ssub.s32 1, %s4
  %s7 = scalar_select 0, %s6, %s4
  $region1: #{tpu_custom_call.1} parent=0
    #allocation2 [shape = 'u8[8192]{0}', space=vmem, size = 0x2000, scoped, tag = 'input window, operand 0, single buffered']
    #allocation3 [shape = 's32[1]{0}', space=sflag, size = 0x4, scoped, tag = 'scoped memory for tpu_custom_call.1']
    #allocation4 [shape = 's32[1]{0}', space=sflag, size = 0x4, scoped, tag = 'scoped memory for tpu_custom_call.1']
    #allocation5 [shape = 'u8[8192]{0}', space=vmem, size = 0x2000, scoped, tag = 'input window, operand 1, single buffered']
    #allocation6 [shape = 's32[1]{0}', space=sflag, size = 0x4, scoped, tag = 'scoped memory for tpu_custom_call.1']
    #allocation7 [shape = 'u8[2048]{0}', space=vmem, size = 0x800, scoped, tag = 'input window, operand 2, single buffered']
    #allocation8 [shape = 'u8[512]{0}', space=smem, size = 0x200, scoped, tag = 'output window, operand 0, single buffered']
    %8 = vsyncpa [#allocation3], 0
    %9 = vsyncpa [#allocation6], 0
    %10 = vsyncpa [#allocation4], 0
    // Predicated region
    $region2: #{tpu_custom_call.1} parent=1 // pred_check
      _
    $region3: #{tpu_custom_call.1} parent=1 // pred_check_branch
      %12 = sbr.rel (0) target = $region5
    $region4: #{tpu_custom_call.1} parent=1 // pred_region
      %s13 = sadd.s32 0, 0
      %s14 = smul.u32 8, %s13
      %s16 = ssub.s32 256, 256
      %17 = vsyncadd [#allocation3], %s16
      %s18 = smul.addr %s14, 32
      %s19 = scalar_lea.hbm %s0, %s18
      %s21 = sshll.u32 [#allocation2], 4
      %s22 = int_to_ptr.vmem [resolvable:$true] %s21
      %24 = dma.hbm_to_vmem [thread:$0]  %s19, 256, %s22, [#allocation3]
    $region5: #{tpu_custom_call.1} parent=1 // pred_fallthru
      _
    // Predicated region
    $region6: #{tpu_custom_call.1} parent=1 // pred_check
      _
    $region7: #{tpu_custom_call.1} parent=1 // pred_check_branch
      %26 = sbr.rel (0) target = $region9
    $region8: #{tpu_custom_call.1} parent=1 // pred_region
      %s27 = sadd.s32 0, 0
      %s28 = smul.u32 8, %s27
      %s30 = ssub.s32 256, 256
      %31 = vsyncadd [#allocation6], %s30
      %s32 = smul.addr %s28, 32
      %s33 = scalar_lea.hbm %s1, %s32
      %s35 = sshll.u32 [#allocation5], 4
      %s36 = int_to_ptr.vmem [resolvable:$true] %s35
      %38 = dma.hbm_to_vmem [thread:$0]  %s33, 256, %s36, [#allocation6]
    $region9: #{tpu_custom_call.1} parent=1 // pred_fallthru
      _
    // Predicated region
    $region10: #{tpu_custom_call.1} parent=1 // pred_check
      _
    $region11: #{tpu_custom_call.1} parent=1 // pred_check_branch
      %40 = sbr.rel (0) target = $region13
    $region12: #{tpu_custom_call.1} parent=1 // pred_region
      %s42 = ssub.s32 64, 64
      %43 = vsyncadd [#allocation6], %s42
      %s45 = sshll.u32 [#allocation7], 4
      %s46 = int_to_ptr.vmem [resolvable:$true] %s45
      %48 = dma.hbm_to_vmem [thread:$0]  %s2, 64, %s46, [#allocation6]
    $region13: #{tpu_custom_call.1} parent=1 // pred_fallthru
      _
    // Predicated region
    $region14: #{tpu_custom_call.1} parent=1 // pred_check
      _
    $region15: #{tpu_custom_call.1} parent=1 // pred_check_branch
      %50 = sbr.rel (0) target = $region17
    $region16: #{tpu_custom_call.1} parent=1 // pred_region
      %51 = dma.done [#allocation3], 256
    $region17: #{tpu_custom_call.1} parent=1 // pred_fallthru
      _
    // Predicated region
    $region18: #{tpu_custom_call.1} parent=1 // pred_check
      _
    $region19: #{tpu_custom_call.1} parent=1 // pred_check_branch
      %53 = sbr.rel (0) target = $region21
    $region20: #{tpu_custom_call.1} parent=1 // pred_region
      %54 = dma.done [#allocation6], 256
    $region21: #{tpu_custom_call.1} parent=1 // pred_fallthru
      _
    // Predicated region
    $region22: #{tpu_custom_call.1} parent=1 // pred_check
      _
    $region23: #{tpu_custom_call.1} parent=1 // pred_check_branch
      %56 = sbr.rel (0) target = $region25
    $region24: #{tpu_custom_call.1} parent=1 // pred_region
      %57 = dma.done [#allocation6], 64
    $region25: #{tpu_custom_call.1} parent=1 // pred_fallthru
      _
    %s58 = sadd.s32 0, 0
    %s59 = smul.u32 8, %s58
    %s60 = sadd.s32 0, 0
    %s61 = smul.u32 8, %s60
    %s62 = sadd.s32 0, 0
    %s63 = sadd.s32 %s62, 0
    %v64 = vld [vmem:[#allocation7] sm:$0xf]
    %v65 = vld [vmem:[#allocation2] sm:$0xf]
    %v66 = vld [vmem:[#allocation5] sm:$0xf]
    %v67 = vsub.f32 %v65, %v66
    %v68 = vmul.f32 %v67, %v67
    %v69 = vld [vmem:[#allocation2 + $0x4] sm:$0xf]
    %v70 = vld [vmem:[#allocation5 + $0x4] sm:$0xf]
    %v71 = vsub.f32 %v69, %v70
    %v72 = vmul.f32 %v71, %v71
    %v73 = vadd.f32 %v68, %v72
    %v74 = vld [vmem:[#allocation2 + $0x8] sm:$0xf]
    %v75 = vld [vmem:[#allocation5 + $0x8] sm:$0xf]
    %v76 = vsub.f32 %v74, %v75
    %v77 = vmul.f32 %v76, %v76
    %v78 = vadd.f32 %v73, %v77
    %v79 = vld [vmem:[#allocation2 + $0xc] sm:$0xf]
    %v80 = vld [vmem:[#allocation5 + $0xc] sm:$0xf]
    %v81 = vsub.f32 %v79, %v80
    %v82 = vmul.f32 %v81, %v81
    %v83 = vadd.f32 %v78, %v82
    %v84 = vmul.f32 %v83, %v64
    %v87 = vunpack.c.l.s4 1983009808
    %v88 = vunpack.c.0.s8 %v87
    %v89 = vlaneseq
    %v90 = vshrl.u32 %v89, 7
    %v91 = vsub.s32 %v88, %v90
    %v92 = vrot.slane %v84, %v91
    %v93 = vcombine.high %v92, %v92
    %vm96 = vcmask 1041408
    %v97 = vsel %vm96, %v92, 0.0
    %v98 = vsel %vm96, %v93, 0.0
    %v99 = vadd.f32 %v97, %v98
    %100 = vadd.xlane.f32.xlu0 %v99
    %v101 = vpop.xlane.xlu0 %100
    %v102 = vrot.slane %v101, 4
    %v103 = vadd.f32 %v101, %v102
    %v104 = vrot.slane %v103, 2
    %v105 = vadd.f32 %v103, %v104
    %v106 = vrot.slane %v105, 1
    %v107 = vadd.f32 %v105, %v106
    %s108 = vtos %v107
    %s109 = scalar_lea.smem [#allocation8], 0
    %110 = sst [smem:[%s109]] %s108
    // Predicated region
    $region26: #{tpu_custom_call.1} parent=1 // pred_check
      _
    $region27: #{tpu_custom_call.1} parent=1 // pred_check_branch
      %112 = sbr.rel (0) target = $region29
    $region28: #{tpu_custom_call.1} parent=1 // pred_region
      %s113 = sadd.s32 0, 0
      %s114 = sadd.s32 %s113, 0
      %s116 = ssub.s32 16, 16
      %117 = vsyncadd [#allocation4], %s116
      %s118 = smul.addr %s114, 16
      %s119 = scalar_lea.hbm %s3, %s118
      %122 = dma.smem_to_hbm [#allocation8], 16, %s119, [#allocation4]
    $region29: #{tpu_custom_call.1} parent=1 // pred_fallthru
      _
    // Predicated region
    $region30: #{tpu_custom_call.1} parent=1 // pred_check
      _
    $region31: #{tpu_custom_call.1} parent=1 // pred_check_branch
      %124 = sbr.rel (0) target = $region33
    $region32: #{tpu_custom_call.1} parent=1 // pred_region
      %125 = dma.done [#allocation4], 16
    $region33: #{tpu_custom_call.1} parent=1 // pred_fallthru
      _
    %126 = sfence
    %127 = vsyncpa [#allocation3], 1
    %128 = vsyncpa [#allocation6], 1
    %129 = vsyncpa [#allocation4], 1

</llo_original>
